<compile_context>
chip_gen: v6e
topology: v6e:2x2x1
jax: 0.10.0
libtpu: 0.0.40
codegen_flags: <defaults>
</compile_context>

<pallas_src>
import functools

import jax
import jax.numpy as jnp
from jax.experimental import pallas as pl
from jax.experimental.pallas import tpu as pltpu


# --------------------------- tile-size selection -------------------------------

# ~1 MiB per block.  With BlockSpec double-buffering that is ~2 MiB for the input
# stream + ~2 MiB for the output stream (+ tiny weight/bias), comfortably inside
# v5e's 16 MiB default scoped VMEM and far below v7x's 64 MiB physical VMEM.
_BLOCK_BYTES_TARGET = 1 << 20


def _pick_row_tile(n_rows, n_cols, itemsize, max_rows=2048):
    """Rows per block for the flattened (N, C) channels_last problem."""
    rows = _BLOCK_BYTES_TARGET // max(1, n_cols * itemsize)
    rows = min(rows, max_rows)
    rows = max(8, (rows // 8) * 8)          # sublane multiple
    if rows >= n_rows:
        return n_rows                        # full extent is always legal
    return rows


def _pick_t_tile(t_len, n_chan, itemsize, max_cols=2048):
    """T (lane) columns per block for the (1, C, tT) channels_first block."""
    cols = _BLOCK_BYTES_TARGET // max(1, n_chan * itemsize)
    cols = min(cols, max_cols)
    cols = max(128, (cols // 128) * 128)     # lane multiple
    if cols >= t_len:
        return t_len                         # full extent is always legal
    return cols


# ----------------------------- kernels ---------------------------------------


def _ln_rows_kernel(x_ref, w_ref, b_ref, o_ref, *, eps):
    # channels_last, flattened: x_ref/o_ref: (tR, C) ; w_ref/b_ref: (1, C)
    x = x_ref[...].astype(jnp.float32)
    u = jnp.mean(x, axis=-1, keepdims=True)
    xc = x - u
    var = jnp.mean(xc * xc, axis=-1, keepdims=True)
    r = jax.lax.rsqrt(var + eps)             # EUP slot, effectively free
    w = w_ref[...].astype(jnp.float32)       # (1, C) broadcasts over rows
    b = b_ref[...].astype(jnp.float32)
    o_ref[...] = ((xc * r) * w + b).astype(o_ref.dtype)


def _ln_channels_first_kernel(x_ref, w_ref, b_ref, o_ref, *, eps):
    # channels_first: x_ref/o_ref: (1, C, tT) ; w_ref/b_ref: (C, 1)
    x = x_ref[...].astype(jnp.float32)
    u = jnp.mean(x, axis=1, keepdims=True)   # reduce over channel (sublane) dim
    xc = x - u
    var = jnp.mean(xc * xc, axis=1, keepdims=True)
    r = jax.lax.rsqrt(var + eps)
    w = w_ref[...].astype(jnp.float32)       # (C, 1) -> (1, C, 1) broadcast over T
    b = b_ref[...].astype(jnp.float32)
    o_ref[...] = ((xc * r) * w + b).astype(o_ref.dtype)


# ----------------------------- wrapper ----------------------------------------


def layer_norm(x, weight, bias, *, eps=1e-6, data_format="channels_last"):
    """Pallas LayerNorm matching VoicePersonification next_tdnn.LayerNorm.

    channels_last : x (B, T, C), weight/bias (C,)
    channels_first: x (B, C, T), weight/bias (C,)
    """
    if data_format not in ("channels_last", "channels_first"):
        raise NotImplementedError(data_format)

    itemsize = jnp.dtype(x.dtype).itemsize

    if data_format == "channels_last":
        B, T, C = x.shape
        N = B * T
        x2 = x.reshape(N, C)                 # free reshape (row-major contiguous)
        w2 = weight.reshape(1, C)
        b2 = bias.reshape(1, C)
        tR = _pick_row_tile(N, C, itemsize)
        grid = (pl.cdiv(N, tR),)
        kernel = functools.partial(_ln_rows_kernel, eps=eps)
        out2 = pl.pallas_call(
            kernel,
            out_shape=jax.ShapeDtypeStruct((N, C), x.dtype),
            grid_spec=pltpu.PrefetchScalarGridSpec(
                num_scalar_prefetch=0,
                grid=grid,
                in_specs=[
                    pl.BlockSpec((tR, C), lambda i: (i, 0)),
                    pl.BlockSpec((1, C), lambda i: (0, 0)),
                    pl.BlockSpec((1, C), lambda i: (0, 0)),
                ],
                out_specs=pl.BlockSpec((tR, C), lambda i: (i, 0)),
            ),
            compiler_params=pltpu.CompilerParams(
                dimension_semantics=("parallel",),
            ),
        )(x2, w2, b2)
        return out2.reshape(B, T, C)

    # channels_first
    B, C, T = x.shape
    w2 = weight.reshape(C, 1)
    b2 = bias.reshape(C, 1)
    tT = _pick_t_tile(T, C, itemsize)
    grid = (B, pl.cdiv(T, tT))
    kernel = functools.partial(_ln_channels_first_kernel, eps=eps)
    return pl.pallas_call(
        kernel,
        out_shape=jax.ShapeDtypeStruct(x.shape, x.dtype),
        grid_spec=pltpu.PrefetchScalarGridSpec(
            num_scalar_prefetch=0,
            grid=grid,
            in_specs=[
                pl.BlockSpec((1, C, tT), lambda b, t: (b, 0, t)),
                pl.BlockSpec((C, 1), lambda b, t: (0, 0)),
                pl.BlockSpec((C, 1), lambda b, t: (0, 0)),
            ],
            out_specs=pl.BlockSpec((1, C, tT), lambda b, t: (b, 0, t)),
        ),
        compiler_params=pltpu.CompilerParams(
            dimension_semantics=("parallel", "parallel"),
        ),
    )(x, w2, b2)


# --------------------------- pure-JAX reference --------------------------------


def _ref_layer_norm(x, weight, bias, eps, data_format):
    if data_format == "channels_last":
        u = jnp.mean(x, axis=-1, keepdims=True)
        s = jnp.mean((x - u) ** 2, axis=-1, keepdims=True)
        y = (x - u) / jnp.sqrt(s + eps)
        return y * weight + bias
    else:
        u = jnp.mean(x, axis=1, keepdims=True)
        s = jnp.mean((x - u) ** 2, axis=1, keepdims=True)
        y = (x - u) / jnp.sqrt(s + eps)
        return weight[None, :, None] * y + bias[None, :, None]


# --------------------------------- main ----------------------------------------


if __name__ == "__main__":
    key = jax.random.PRNGKey(0)
    eps = 1e-6

    def run_case(k, B, T, C, data_format):
        weight = jnp.ones((C,), jnp.float32) + 0.01 * jnp.arange(C, dtype=jnp.float32)
        bias = 0.1 * jnp.arange(C, dtype=jnp.float32)
        shape = (B, T, C) if data_format == "channels_last" else (B, C, T)
        x = jax.random.normal(k, shape, jnp.float32)
        y = layer_norm(x, weight, bias, eps=eps, data_format=data_format)
        y = jax.block_until_ready(y)
        ref = _ref_layer_norm(x, weight, bias, eps, data_format)
        assert y.shape == x.shape
        assert jnp.allclose(y, ref, atol=1e-5, rtol=1e-5), data_format

    k1, k2, k3, k4 = jax.random.split(key, 4)

    # Small shapes (single block per format).
    run_case(k1, B=2, T=8, C=32, data_format="channels_last")
    run_case(k2, B=2, T=8, C=32, data_format="channels_first")

    # Moderate T so the tiled multi-step grid path is exercised on both layouts.
    run_case(k3, B=2, T=4096, C=32, data_format="channels_last")
    run_case(k4, B=2, T=4096, C=32, data_format="channels_first")

    print("KERNEL_OK")
</pallas_src>

<mosaic_0001>
module attributes {stable_mosaic.version = 11 : i64} {
  func.func @_ln_rows_kernel(%arg0: i32, %arg1: memref<16x32xf32, #tpu.memory_space<vmem>>, %arg2: memref<1x32xf32, #tpu.memory_space<vmem>>, %arg3: memref<1x32xf32, #tpu.memory_space<vmem>>, %arg4: memref<16x32xf32, #tpu.memory_space<vmem>>) attributes {dimension_semantics = [#tpu.dimension_semantics<parallel>], iteration_bounds = array<i64: 1>, scalar_prefetch = 0 : i64, scratch_operands = 0 : i64, tpu.core_type = #tpu.core_type<tc>, window_params = [{transform_indices = @transform_0, window_bounds = array<i64: 16, 32>}, {pipeline_mode = #tpu.pipeline_mode<synchronous>, transform_indices = @transform_1, window_bounds = array<i64: 1, 32>}, {pipeline_mode = #tpu.pipeline_mode<synchronous>, transform_indices = @transform_2, window_bounds = array<i64: 1, 32>}, {transform_indices = @transform_3, window_bounds = array<i64: 16, 32>}]} {
    %c0 = arith.constant 0 : index
    %c0_0 = arith.constant 0 : index
    %0 = vector.load %arg1[%c0, %c0_0] : memref<16x32xf32, #tpu.memory_space<vmem>>, vector<16x32xf32>
    %cst = arith.constant dense<0.000000e+00> : vector<16xf32>
    %1 = vector.multi_reduction <add>, %0, %cst [1] : vector<16x32xf32> to vector<16xf32>
    %2 = vector.shape_cast %1 : vector<16xf32> to vector<16x1xf32>
    %cst_1 = arith.constant 3.200000e+01 : f32
    %3 = vector.broadcast %cst_1 : f32 to vector<16x1xf32>
    %4 = arith.divf %2, %3 : vector<16x1xf32>
    %5 = vector.broadcast %4 : vector<16x1xf32> to vector<16x32xf32>
    %6 = arith.subf %0, %5 : vector<16x32xf32>
    %7 = arith.mulf %6, %6 : vector<16x32xf32>
    %cst_2 = arith.constant dense<0.000000e+00> : vector<16xf32>
    %8 = vector.multi_reduction <add>, %7, %cst_2 [1] : vector<16x32xf32> to vector<16xf32>
    %9 = vector.shape_cast %8 : vector<16xf32> to vector<16x1xf32>
    %cst_3 = arith.constant 3.200000e+01 : f32
    %10 = vector.broadcast %cst_3 : f32 to vector<16x1xf32>
    %11 = arith.divf %9, %10 : vector<16x1xf32>
    %cst_4 = arith.constant 9.99999997E-7 : f32
    %12 = vector.broadcast %cst_4 : f32 to vector<16x1xf32>
    %13 = arith.addf %11, %12 : vector<16x1xf32>
    %14 = math.rsqrt %13 : vector<16x1xf32>
    %c0_5 = arith.constant 0 : index
    %c0_6 = arith.constant 0 : index
    %15 = vector.load %arg2[%c0_5, %c0_6] : memref<1x32xf32, #tpu.memory_space<vmem>>, vector<1x32xf32>
    %c0_7 = arith.constant 0 : index
    %c0_8 = arith.constant 0 : index
    %16 = vector.load %arg3[%c0_7, %c0_8] : memref<1x32xf32, #tpu.memory_space<vmem>>, vector<1x32xf32>
    %17 = vector.broadcast %14 : vector<16x1xf32> to vector<16x32xf32>
    %18 = arith.mulf %6, %17 : vector<16x32xf32>
    %19 = vector.broadcast %15 : vector<1x32xf32> to vector<16x32xf32>
    %20 = arith.mulf %18, %19 : vector<16x32xf32>
    %21 = vector.broadcast %16 : vector<1x32xf32> to vector<16x32xf32>
    %22 = arith.addf %20, %21 : vector<16x32xf32>
    %c0_9 = arith.constant 0 : index
    %c0_10 = arith.constant 0 : index
    %23 = vector.load %arg4[%c0_9, %c0_10] : memref<16x32xf32, #tpu.memory_space<vmem>>, vector<16x32xf32>
    tpu.vector_store %arg4[%c0_9, %c0_10], %22 {strides = array<i32>} : memref<16x32xf32, #tpu.memory_space<vmem>>, vector<16x32xf32>,
    return
  }
  func.func @transform_0(%arg0: i32) -> (i32, i32) {
    %c0_i32 = arith.constant 0 : i32
    %c0_i32_0 = arith.constant 0 : i32
    return %arg0, %c0_i32 : i32, i32
  }
  func.func @transform_1(%arg0: i32) -> (i32, i32) {
    %c0_i32 = arith.constant 0 : i32
    %c0_i32_0 = arith.constant 0 : i32
    %c0_i32_1 = arith.constant 0 : i32
    return %c0_i32, %c0_i32_0 : i32, i32
  }
  func.func @transform_2(%arg0: i32) -> (i32, i32) {
    %c0_i32 = arith.constant 0 : i32
    %c0_i32_0 = arith.constant 0 : i32
    %c0_i32_1 = arith.constant 0 : i32
    return %c0_i32, %c0_i32_0 : i32, i32
  }
  func.func @transform_3(%arg0: i32) -> (i32, i32) {
    %c0_i32 = arith.constant 0 : i32
    %c0_i32_0 = arith.constant 0 : i32
    return %arg0, %c0_i32 : i32, i32
  }
}

</mosaic_0001>

<llo_original>
// kernel: tpu_custom_call.1
$region0: #{tpu_custom_call.1}
  #allocation0 [shape = 'u32[]', space=smem, size = 0x4, offset = 0x4, fixed_abs, tag = 'smem constant byte address 0x4 - core index']
  #allocation1 [shape = 'u32[144,128]{1,0:T(1,128)}', space=vmem, size = 0x12000, scoped, tag = 'internal scratch']
  %s0 = inlined_call_operand.hbm [shape: f32[16,32], index: 0, kind: input, shape index: {}]
  %s1 = inlined_call_operand.vmem [shape: f32[1,32], index: 1, kind: input, shape index: {}]
  %s2 = inlined_call_operand.vmem [shape: f32[1,32], index: 2, kind: input, shape index: {}]
  %s3 = inlined_call_operand.hbm [shape: f32[16,32], index: 3, kind: output, shape index: {}]
  %s4 = sld [smem:[#allocation0]]
  $region26: #{tpu_custom_call.1} parent=0
    _
  %s6 = ssub.s32 1, %s4
  %s7 = scalar_select 0, %s6, %s4
  $region1: #{tpu_custom_call.1} parent=0
    #allocation2 [shape = 'u8[8192]{0}', space=vmem, size = 0x2000, scoped, tag = 'input window, operand 0, single buffered']
    #allocation3 [shape = 's32[1]{0}', space=sflag, size = 0x4, scoped, tag = 'scoped memory for tpu_custom_call.1']
    #allocation4 [shape = 's32[1]{0}', space=sflag, size = 0x4, scoped, tag = 'scoped memory for tpu_custom_call.1']
    #allocation5 [shape = 'u8[8192]{0}', space=vmem, size = 0x2000, scoped, tag = 'output window, operand 0, single buffered']
    %8 = vsyncpa [#allocation3], 0
    %9 = vsyncpa [#allocation4], 0
    // Predicated region
    $region2: #{tpu_custom_call.1} parent=1 // pred_check
      _
    $region3: #{tpu_custom_call.1} parent=1 // pred_check_branch
      %11 = sbr.rel (0) target = $region5
    $region4: #{tpu_custom_call.1} parent=1 // pred_region
      %s13 = ssub.s32 256, 256
      %14 = vsyncadd [#allocation3], %s13
      %s15 = sshll.u32 [#allocation2], 4
      %s16 = int_to_ptr.vmem [resolvable:$true] %s15
      %21 = dma.hbm_to_vmem [thread:$0]  %s0, 256, %s16, [#allocation3], 128, 128, 8
    $region5: #{tpu_custom_call.1} parent=1 // pred_fallthru
      _
    // Predicated region
    $region6: #{tpu_custom_call.1} parent=1 // pred_check
      _
    $region7: #{tpu_custom_call.1} parent=1 // pred_check_branch
      %23 = sbr.rel (0) target = $region9
    $region8: #{tpu_custom_call.1} parent=1 // pred_region
      _
    $region9: #{tpu_custom_call.1} parent=1 // pred_fallthru
      _
    // Predicated region
    $region10: #{tpu_custom_call.1} parent=1 // pred_check
      _
    $region11: #{tpu_custom_call.1} parent=1 // pred_check_branch
      %25 = sbr.rel (0) target = $region13
    $region12: #{tpu_custom_call.1} parent=1 // pred_region
      _
    $region13: #{tpu_custom_call.1} parent=1 // pred_fallthru
      _
    // Predicated region
    $region14: #{tpu_custom_call.1} parent=1 // pred_check
      _
    $region15: #{tpu_custom_call.1} parent=1 // pred_check_branch
      %27 = sbr.rel (0) target = $region17
    $region16: #{tpu_custom_call.1} parent=1 // pred_region
      %28 = dma.done [#allocation3], 256
    $region17: #{tpu_custom_call.1} parent=1 // pred_fallthru
      _
    %v29 = vld [vmem:[#allocation2] sm:$0xff]
    %v30 = vld [vmem:[#allocation2 + $0x8] sm:$0xff]
    %vm31 = vcmask 261120
    %v32 = vsel %vm31, %v29, 0.0
    %33 = vadd.xlane.f32.xlu0 %v32
    %v34 = vpop.xlane.xlu0 %33
    %v35 = vsel %vm31, %v30, 0.0
    %36 = vadd.xlane.f32.xlu0 %v35
    %v37 = vpop.xlane.xlu0 %36
    %v38 = vrcp.pop 32.0
    %v39 = vmul.f32 %v34, %v38
    %v40 = vmul.f32 %v37, %v38
    %v41 = vsub.f32 %v29, %v39
    %v42 = vsub.f32 %v30, %v40
    %v43 = vmul.f32 %v41, %v41
    %v44 = vmul.f32 %v42, %v42
    %v45 = vsel %vm31, %v43, 0.0
    %46 = vadd.xlane.f32.xlu0 %v45
    %v47 = vpop.xlane.xlu0 %46
    %v48 = vsel %vm31, %v44, 0.0
    %49 = vadd.xlane.f32.xlu0 %v48
    %v50 = vpop.xlane.xlu0 %49
    %v51 = vmul.f32 %v47, %v38
    %v52 = vmul.f32 %v50, %v38
    %v53 = vadd.f32 %v51, 1e-06
    %v54 = vadd.f32 %v52, 1e-06
    %v55 = vrsqrt.pop %v53
    %v56 = vrsqrt.pop %v54
    %v57 = vld [vmem:[%s1] sm:$0x1]
    %v58 = vld [vmem:[%s2] sm:$0x1]
    %v59 = vmul.f32 %v41, %v55
    %v60 = vmul.f32 %v42, %v56
    %v62 = vlaneseq
    %v63 = vshrl.u32 %v62, 7
    %v64 = vsub.s32 0, %v63
    %v65 = vrot.slane %v57, %v64
    %v67 = vmul.f32 %v59, %v65
    %v68 = vmul.f32 %v60, %v65
    %v70 = vlaneseq
    %v71 = vshrl.u32 %v70, 7
    %v72 = vsub.s32 0, %v71
    %v73 = vrot.slane %v58, %v72
    %v75 = vadd.f32 %v67, %v73
    %v76 = vadd.f32 %v68, %v73
    %77 = vst.msk [vmem:[#allocation5] sm:$0xff] %vm31, %v75
    %78 = vst.msk [vmem:[#allocation5 + $0x8] sm:$0xff] %vm31, %v76
    // Predicated region
    $region18: #{tpu_custom_call.1} parent=1 // pred_check
      _
    $region19: #{tpu_custom_call.1} parent=1 // pred_check_branch
      %80 = sbr.rel (0) target = $region21
    $region20: #{tpu_custom_call.1} parent=1 // pred_region
      %s82 = ssub.s32 256, 256
      %83 = vsyncadd [#allocation4], %s82
      %s84 = sshll.u32 [#allocation5], 4
      %s85 = int_to_ptr.vmem [resolvable:$true] %s84
      %90 = dma.vmem_to_hbm [thread:$0]  %s85, 256, %s3, [#allocation4], 128, 128, 8
    $region21: #{tpu_custom_call.1} parent=1 // pred_fallthru
      _
    // Predicated region
    $region22: #{tpu_custom_call.1} parent=1 // pred_check
      _
    $region23: #{tpu_custom_call.1} parent=1 // pred_check_branch
      %92 = sbr.rel (0) target = $region25
    $region24: #{tpu_custom_call.1} parent=1 // pred_region
      %93 = dma.done [#allocation4], 256
    $region25: #{tpu_custom_call.1} parent=1 // pred_fallthru
      _
    %94 = vsyncpa [#allocation3], 1
    %95 = vsyncpa [#allocation4], 1

</llo_original>
